<compile_context>
chip_gen: v6e
topology: v6e:2x2x1
jax: 0.10.0
libtpu: 0.0.40
codegen_flags: <defaults>
</compile_context>

<pallas_src>
import numpy as np
import jax
import jax.numpy as jnp
from jax.experimental import pallas as pl
from jax.experimental.pallas import tpu as pltpu

_SMALL_CHUNK_BYTES = 64 * 1024         # below this, per-DMA descriptor overhead dominates
_STAGED_VMEM_BUDGET = 2 * 1024 * 1024  # in+out bytes allowed for the VMEM-staged path
_CORE_SPLIT_MIN_BYTES = 256 * 1024     # split DMA issue over 2 TCs above this
_MAX_PLAN_CORES = 2                    # TCs per chip on v7x; harmless elsewhere


def _build_runs(seq_lens, T):
    """Coalesced copy plan on the flat (B*T, H) row view.

    Returns list of (src_row, dst_row, n_rows).  Adjacent batches merge into one
    run whenever the previous chunk ends exactly where the next starts (i.e. the
    previous sequence is full length), so batches with many full-length
    sequences collapse to a handful of DMA descriptors.
    """
    runs = []
    dst = 0
    for i, l in enumerate(seq_lens):
        if l == 0:
            continue
        src = i * T
        if runs and runs[-1][0] + runs[-1][2] == src:
            s, d, n = runs[-1]
            runs[-1] = (s, d, n + l)      # source + destination both contiguous
        else:
            runs.append((src, dst, l))
        dst += l
    return runs


def _assign_to_cores(runs, num_cores):
    """Byte-balanced (== row-balanced) greedy assignment, largest-first order."""
    if num_cores == 1:
        return [sorted(runs, key=lambda r: -r[2])]
    runs = list(runs)
    total_rows = sum(r[2] for r in runs)
    # Split a dominant run so a single giant copy does not pin one core.
    big = max(range(len(runs)), key=lambda i: runs[i][2])
    s, d, n = runs[big]
    if n > total_rows - n and n >= 2:
        h = n // 2
        runs[big] = (s, d, h)
        runs.append((s + h, d + h, n - h))
    bins = [[] for _ in range(num_cores)]
    loads = [0] * num_cores
    for r in sorted(runs, key=lambda r: -r[2]):
        c = min(range(num_cores), key=lambda i: loads[i])
        bins[c].append(r)
        loads[c] += r[2]
    return bins


def _make_copy_kernel(core_chunks, inflight):
    """HBM->HBM DMA compaction over a static, per-core chunk list."""

    def issue(x_ref, out_ref, sem_ref, core_id, chunks):
        copies = []
        for n, (src, dst, ln) in enumerate(chunks):
            slot = n % inflight
            if n >= inflight:
                copies[n - inflight].wait()   # recycle this semaphore slot
            cp = pltpu.make_async_copy(
                x_ref.at[pl.ds(src, ln), :],      # valid rows only
                out_ref.at[pl.ds(dst, ln), :],    # packed destination rows
                sem_ref.at[core_id, slot],
            )
            cp.start()
            copies.append(cp)
        for cp in copies[-inflight:]:
            cp.wait()

    def kernel(x_ref, out_ref, sem_ref):
        if len(core_chunks) == 1:
            issue(x_ref, out_ref, sem_ref, 0, core_chunks[0])
            return
        for core_id, chunks in enumerate(core_chunks):
            if not chunks:
                continue

            @pl.when(pl.program_id(0) == core_id)
            def _(core_id=core_id, chunks=chunks):
                issue(x_ref, out_ref, sem_ref, core_id, chunks)

    return kernel


def _make_uniform_kernel(L, core_splits):
    """All sequences share length L < T: one strided DMA per core."""

    def issue(x_ref, out_ref, sem_ref, core_id, b0, nb):
        cp = pltpu.make_async_copy(
            x_ref.at[pl.ds(b0, nb), pl.ds(0, L), :],
            out_ref.at[pl.ds(b0, nb), :, :],
            sem_ref.at[core_id],
        )
        cp.start()
        cp.wait()

    def kernel(x_ref, out_ref, sem_ref):
        if len(core_splits) == 1:
            b0, nb = core_splits[0]
            issue(x_ref, out_ref, sem_ref, 0, b0, nb)
            return
        for core_id, (b0, nb) in enumerate(core_splits):
            if nb == 0:
                continue

            @pl.when(pl.program_id(0) == core_id)
            def _(core_id=core_id, b0=b0, nb=nb):
                issue(x_ref, out_ref, sem_ref, core_id, b0, nb)

    return kernel


def _make_staged_kernel(runs):
    """Tiny-chunk regime: whole problem staged through VMEM, wide vector copies."""

    def kernel(x_ref, out_ref):
        for src, dst, ln in runs:        # static offsets and sizes
            out_ref[dst:dst + ln, :] = x_ref[src:src + ln, :]

    return kernel


def flatten_head(payload, seq_lens):
    """payload: (B, T, H) array; seq_lens: static Python ints (len == B)."""
    B, T, H = payload.shape
    seq_lens = [int(l) for l in seq_lens]
    assert len(seq_lens) == B
    assert all(0 <= l <= T for l in seq_lens)
    total = int(sum(seq_lens))
    if total == 0:
        return jnp.zeros((0,), dtype=payload.dtype)

    # Fast path: every sequence is full length -> masked flatten is a reshape.
    if all(l == T for l in seq_lens):
        return payload.reshape(-1)

    itemsize = payload.dtype.itemsize
    out_bytes = total * H * itemsize
    in_bytes = B * T * H * itemsize
    cost = pl.CostEstimate(flops=0, transcendentals=0,
                           bytes_accessed=2 * out_bytes)
    num_cores = _MAX_PLAN_CORES if out_bytes >= _CORE_SPLIT_MIN_BYTES else 1

    # Uniform lengths (< T): a single multi-dim strided DMA per core.
    if len(set(seq_lens)) == 1:
        L = seq_lens[0]
        if num_cores == 2 and B >= 2:
            nb0 = (B + 1) // 2
            core_splits = [(0, nb0), (nb0, B - nb0)]
        else:
            num_cores = 1
            core_splits = [(0, B)]
        out3d = pl.pallas_call(
            _make_uniform_kernel(L, core_splits),
            out_shape=jax.ShapeDtypeStruct((B, L, H), payload.dtype),
            grid=(num_cores,),
            in_specs=[pl.BlockSpec(memory_space=pl.ANY)],
            out_specs=pl.BlockSpec(memory_space=pl.ANY),
            scratch_shapes=[pltpu.SemaphoreType.DMA((num_cores,))],
            compiler_params=pltpu.CompilerParams(
                dimension_semantics=("parallel",)),
            cost_estimate=cost,
        )(payload)
        return out3d.reshape(-1)

    # General: coalesced copy plan on the flat (B*T, H) row view.
    runs = _build_runs(seq_lens, T)
    max_run_bytes = max(r[2] for r in runs) * H * itemsize

    # Tiny-chunk regime: sub-KiB HBM->HBM DMAs are pure descriptor overhead;
    # stage the whole (small) problem through VMEM with wide vector copies.
    if (in_bytes + out_bytes) <= _STAGED_VMEM_BUDGET and max_run_bytes < _SMALL_CHUNK_BYTES:
        out2d = pl.pallas_call(
            _make_staged_kernel(runs),
            out_shape=jax.ShapeDtypeStruct((total, H), payload.dtype),
            in_specs=[pl.BlockSpec(memory_space=pltpu.MemorySpace.VMEM)],
            out_specs=pl.BlockSpec(memory_space=pltpu.MemorySpace.VMEM),
            cost_estimate=cost,
        )(payload.reshape(B * T, H))
        return out2d.reshape(-1)

    core_chunks = _assign_to_cores(runs, num_cores)

    # Bytes-aware in-flight DMA window: deeper when chunks are small (issue
    # latency dominates), shallower when they are multi-MiB (bandwidth-bound).
    avg_bytes = out_bytes / len(runs)
    if avg_bytes < _SMALL_CHUNK_BYTES:
        window = 16
    elif avg_bytes < 4 * 1024 * 1024:
        window = 8
    else:
        window = 4
    inflight = max(1, min(window, max(len(c) for c in core_chunks)))

    out2d = pl.pallas_call(
        _make_copy_kernel(core_chunks, inflight),
        out_shape=jax.ShapeDtypeStruct((total, H), payload.dtype),
        grid=(num_cores,),
        in_specs=[pl.BlockSpec(memory_space=pl.ANY)],
        out_specs=pl.BlockSpec(memory_space=pl.ANY),
        scratch_shapes=[pltpu.SemaphoreType.DMA((num_cores, inflight))],
        compiler_params=pltpu.CompilerParams(
            dimension_semantics=("parallel",)),
        cost_estimate=cost,
    )(payload.reshape(B * T, H))
    return out2d.reshape(-1)


def _reference(payload, seq_lens):
    p = np.asarray(payload)
    return np.concatenate([p[i, :l].reshape(-1) for i, l in enumerate(seq_lens)])


if __name__ == "__main__":
    key = jax.random.PRNGKey(0)

    # (B, T, H, seq_lens) — chosen to cover every dispatch path:
    #   tiny VMEM-staged, coalesced HBM->HBM DMA (+2-core plan), uniform-length
    #   strided DMA (+2-core plan), all-full reshape fast path, empty output.
    cases = [
        (4, 16, 32, [5, 16, 1, 9]),          # VMEM-staged tiny path
        (4, 256, 128, [256, 200, 0, 192]),   # coalesced HBM->HBM DMA path
        (4, 128, 256, [64, 64, 64, 64]),     # uniform-length strided DMA path
        (2, 8, 32, [8, 8]),                  # all-full fast path (pure reshape)
        (2, 8, 32, [0, 0]),                  # empty output
    ]

    for B, T, H, seq_lens in cases:
        key, sub = jax.random.split(key)
        payload = jax.random.normal(sub, (B, T, H), dtype=jnp.float32)
        out = jax.block_until_ready(flatten_head(payload, seq_lens))
        expected = _reference(payload, seq_lens)
        assert out.shape == expected.shape, (out.shape, expected.shape)
        np.testing.assert_allclose(np.asarray(out), expected, rtol=0, atol=0)

    print("KERNEL_OK")
</pallas_src>

<mosaic_0001>
module attributes {stable_mosaic.version = 11 : i64} {
  func.func @kernel(%arg0: memref<64x32xf32, #tpu.memory_space<vmem>>, %arg1: memref<31x32xf32, #tpu.memory_space<vmem>>) attributes {dimension_semantics = [], scalar_prefetch = 0 : i64, scratch_operands = 0 : i64, tpu.core_type = #tpu.core_type<tc>} {
    %c0 = arith.constant 0 : index
    %c0_0 = arith.constant 0 : index
    %0 = vector.load %arg0[%c0, %c0_0] : memref<64x32xf32, #tpu.memory_space<vmem>>, vector<5x32xf32>
    %c0_1 = arith.constant 0 : index
    %c0_2 = arith.constant 0 : index
    %1 = vector.load %arg1[%c0_1, %c0_2] : memref<31x32xf32, #tpu.memory_space<vmem>>, vector<5x32xf32>
    tpu.vector_store %arg1[%c0_1, %c0_2], %0 {strides = array<i32>} : memref<31x32xf32, #tpu.memory_space<vmem>>, vector<5x32xf32>,
    %c16 = arith.constant 16 : index
    %c0_3 = arith.constant 0 : index
    %2 = vector.load %arg0[%c16, %c0_3] : memref<64x32xf32, #tpu.memory_space<vmem>>, vector<17x32xf32>
    %c5 = arith.constant 5 : index
    %c0_4 = arith.constant 0 : index
    %3 = vector.load %arg1[%c5, %c0_4] : memref<31x32xf32, #tpu.memory_space<vmem>>, vector<17x32xf32>
    tpu.vector_store %arg1[%c5, %c0_4], %2 {strides = array<i32>} : memref<31x32xf32, #tpu.memory_space<vmem>>, vector<17x32xf32>,
    %c48 = arith.constant 48 : index
    %c0_5 = arith.constant 0 : index
    %4 = vector.load %arg0[%c48, %c0_5] : memref<64x32xf32, #tpu.memory_space<vmem>>, vector<9x32xf32>
    %c22 = arith.constant 22 : index
    %c0_6 = arith.constant 0 : index
    %5 = vector.load %arg1[%c22, %c0_6] : memref<31x32xf32, #tpu.memory_space<vmem>>, vector<9x32xf32>
    tpu.vector_store %arg1[%c22, %c0_6], %4 {strides = array<i32>} : memref<31x32xf32, #tpu.memory_space<vmem>>, vector<9x32xf32>,
    return
  }
}

</mosaic_0001>

<llo_original>
// kernel: tpu_custom_call.1
$region0: #{tpu_custom_call.1}
  #allocation0 [shape = 'u32[]', space=smem, size = 0x4, offset = 0x4, fixed_abs, tag = 'smem constant byte address 0x4 - core index']
  #allocation1 [shape = 'u32[144,128]{1,0:T(1,128)}', space=vmem, size = 0x12000, scoped, tag = 'internal scratch']
  %s0 = inlined_call_operand.vmem [shape: f32[64,32], index: 0, kind: input, shape index: {}]
  %s1 = inlined_call_operand.hbm [shape: f32[31,32], index: 1, kind: output, shape index: {}]
  %s2 = sld [smem:[#allocation0]]
  $region14: #{tpu_custom_call.1} parent=0
    _
  %s4 = ssub.s32 1, %s2
  %s5 = scalar_select 0, %s4, %s2
  $region1: #{tpu_custom_call.1} parent=0
    #allocation2 [shape = 'u8[16384]{0}', space=vmem, size = 0x4000, scoped, tag = 'output window, operand 0, single buffered']
    #allocation3 [shape = 's32[1]{0}', space=sflag, size = 0x4, scoped, tag = 'scoped memory for tpu_custom_call.1']
    %6 = vsyncpa [#allocation3], 0
    // Predicated region
    $region2: #{tpu_custom_call.1} parent=1 // pred_check
      _
    $region3: #{tpu_custom_call.1} parent=1 // pred_check_branch
      %8 = sbr.rel (0) target = $region5
    $region4: #{tpu_custom_call.1} parent=1 // pred_region
      _
    $region5: #{tpu_custom_call.1} parent=1 // pred_fallthru
      _
    %v9 = vld [vmem:[%s0] sm:$0x1f]
    %vm10 = vcmask 258048
    %11 = vst.msk [vmem:[#allocation2] sm:$0x1f] %vm10, %v9
    %v12 = vld [vmem:[%s0 + $0x10] sm:$0xff]
    %v13 = vld [vmem:[%s0 + $0x18] sm:$0xff]
    %v14 = vld [vmem:[%s0 + $0x20] sm:$0x1]
    %vm15 = vcmask 261120
    %16 = vst.msk [vmem:[#allocation2 + $0x5] sm:$0xff] %vm15, %v12
    %17 = vst.msk [vmem:[#allocation2 + $0xd] sm:$0xff] %vm15, %v13
    %vm18 = vcmask 253952
    %19 = vst.msk [vmem:[#allocation2 + $0x15] sm:$0x1] %vm18, %v14
    %v20 = vld [vmem:[%s0 + $0x30] sm:$0xff]
    %v21 = vld [vmem:[%s0 + $0x38] sm:$0x1]
    %22 = vst.msk [vmem:[#allocation2 + $0x16] sm:$0xff] %vm15, %v20
    %23 = vst.msk [vmem:[#allocation2 + $0x1e] sm:$0x1] %vm18, %v21
    // Predicated region
    $region6: #{tpu_custom_call.1} parent=1 // pred_check
      _
    $region7: #{tpu_custom_call.1} parent=1 // pred_check_branch
      %25 = sbr.rel (0) target = $region9
    $region8: #{tpu_custom_call.1} parent=1 // pred_region
      %s27 = ssub.s32 512, 512
      %28 = vsyncadd [#allocation3], %s27
      %s29 = sshll.u32 [#allocation2], 4
      %s30 = int_to_ptr.vmem [resolvable:$true] %s29
      %35 = dma.vmem_to_hbm [thread:$0]  %s30, 512, %s1, [#allocation3], 128, 128, 8
    $region9: #{tpu_custom_call.1} parent=1 // pred_fallthru
      _
    // Predicated region
    $region10: #{tpu_custom_call.1} parent=1 // pred_check
      _
    $region11: #{tpu_custom_call.1} parent=1 // pred_check_branch
      %37 = sbr.rel (0) target = $region13
    $region12: #{tpu_custom_call.1} parent=1 // pred_region
      %38 = dma.done [#allocation3], 512
    $region13: #{tpu_custom_call.1} parent=1 // pred_fallthru
      _
    %39 = vsyncpa [#allocation3], 1

</llo_original>
